<compile_context>
chip_gen: v6e
topology: v6e:2x2x1
jax: 0.10.0
libtpu: 0.0.40
codegen_flags: <defaults>
</compile_context>

<pallas_src>
import functools

import jax
import jax.numpy as jnp
from jax.experimental import pallas as pl
from jax.experimental.pallas import tpu as pltpu

_SUBLANES = 8
_LANES = 128


def _round_up(x, m):
    return (x + m - 1) // m * m


# ---------------------------------------------------------------------------
# One-time (import-time) probes -- hoisted out of the per-call path so there
# is no runtime try/except, no double compile, and no host sync per forward.
# ---------------------------------------------------------------------------
def _probe_buffered():
    try:
        pl.BlockSpec((_SUBLANES, _LANES), lambda i: (0, 0),
                     pipeline_mode=pl.Buffered(1))
        return True
    except Exception:
        return False


_HAS_BUFFERED = _probe_buffered()

try:
    _DEVICE_KIND = jax.devices()[0].device_kind.lower()
except Exception:  # pragma: no cover - no accelerator visible at import
    _DEVICE_KIND = ""
_IS_V7 = "v7" in _DEVICE_KIND
_IS_V6 = "v6" in _DEVICE_KIND

# v7x: 64 MiB VMEM per TensorCore -> cap the explicit override at ~56 MiB.
# v5e/v6e: 128 MiB physical -> allow up to ~96 MiB (the scoped default of
# 16/32 MiB is the only reason an override exists at all).
_VMEM_CAP = (56 << 20) if _IS_V7 else (96 << 20)


def _head_kernel(x_ref, w1_ref, b1_ref, w2_ref, b2_ref, o_ref):
    # x_ref : [TB, 3H]      w1_ref : [3H, H]    b1_ref : [1, H]   (f32)
    # w2_ref: [H, Lp]       b2_ref : [1, Lp]    o_ref  : [TB, Lp] (f32)
    x = x_ref[...].astype(w1_ref.dtype)        # in-kernel cast; VALU filler
    # dense + tanh (dropout is identity in eval mode); f32 MXU accumulation
    h = jnp.dot(x, w1_ref[...], preferred_element_type=jnp.float32) + b1_ref[...]
    h = jnp.tanh(h).astype(w2_ref.dtype)
    # out_proj on the lane-dense padded Lp; keep the f32 accumulation in o_ref
    out = jnp.dot(h, w2_ref[...], preferred_element_type=jnp.float32) + b2_ref[...]
    o_ref[...] = out.astype(o_ref.dtype)


def prepare_head_params(w_dense, b_dense, w_out, b_out,
                        compute_dtype=jnp.bfloat16):
    """One-time weight prep (hoisted out of the per-call path).

    torch nn.Linear stores weight as [out, in]; pre-transpose to [in, out],
    pad num_labels to a lane-dense 128 and cast weights to `compute_dtype`
    (bf16 by default; matmuls still accumulate in f32).  Biases stay f32.
    `compute_dtype=jnp.float32` gives bit-faithful f32 numerics.
    """
    hidden, in_dim = w_dense.shape            # [H, 3H]
    num_labels = w_out.shape[0]
    l_pad = _round_up(max(num_labels, 1), _LANES)

    w1 = jnp.asarray(w_dense, jnp.float32).T.astype(compute_dtype)   # [3H, H]
    b1 = jnp.asarray(b_dense, jnp.float32).reshape(1, hidden)
    w2 = jnp.asarray(w_out, jnp.float32).T.astype(compute_dtype)     # [H, L]
    w2 = jnp.pad(w2, ((0, 0), (0, l_pad - num_labels)))              # [H, Lp]
    b2 = jnp.pad(jnp.asarray(b_out, jnp.float32), (0, l_pad - num_labels))
    b2 = b2.reshape(1, l_pad)
    return dict(w1=w1, b1=b1, w2=w2, b2=b2,
                hidden=hidden, in_dim=in_dim, num_labels=num_labels)


def _vmem_estimate(tb, in_dim, hidden, l_pad, x_bytes, w_bytes, x_bufs, w_bufs):
    """Approximate VMEM footprint of the pipelined kernel (bytes)."""
    weights = w_bufs * (in_dim * hidden * w_bytes + hidden * 4
                        + hidden * l_pad * w_bytes + l_pad * 4)
    xbuf = x_bufs * tb * in_dim * x_bytes
    obuf = 2 * tb * l_pad * 4
    scratch = tb * hidden * (4 + w_bytes)      # f32 h + downcast copy
    return weights + xbuf + obuf + scratch


@functools.partial(jax.jit, static_argnames=("num_labels", "tile_batch"))
def _head_forward(features, w1, b1, w2, b2, *, num_labels, tile_batch=512):
    b, s, in_dim = features.shape
    hidden = w1.shape[1]
    l_pad = w2.shape[1]
    x_bytes = jnp.dtype(features.dtype).itemsize
    w_bytes = jnp.dtype(w1.dtype).itemsize

    # Batch tile: multiple of 8 sublanes, default 512 rows, or the whole
    # (padded) batch when it is smaller than that.
    tb = _round_up(min(tile_batch, _round_up(b, _SUBLANES)), _SUBLANES)

    w_bufs = 1 if _HAS_BUFFERED else 2
    x_bufs = 3 if (_IS_V6 and _HAS_BUFFERED) else 2
    # Shrink the batch tile if the pipeline would not fit the VMEM cap
    # (matters mainly on v7x with large hidden sizes).
    while tb > _SUBLANES and _vmem_estimate(
            tb, in_dim, hidden, l_pad, x_bytes, w_bytes, x_bufs, w_bufs) > _VMEM_CAP:
        tb = max(_SUBLANES, _round_up(tb // 2, _SUBLANES))

    bp = _round_up(b, tb)
    n_tiles = bp // tb

    if in_dim % _LANES == 0:
        # Fused CLS slice: view [B, S, 3H] as [B, S*3H]; columns [0, 3H) of
        # each row are exactly the seq=0 token, so the kernel DMA reads only
        # those bytes from HBM (no wrapper-side [B, 3H] materialization).
        x2d = features.reshape(b, s * in_dim)
    else:
        # TODO(synk): fused-slice path needs a lane-dense (multiple-of-128)
        # feature dim; fall back to a wrapper-side CLS slice otherwise.
        x2d = features[:, 0, :]

    if bp != b:
        # Only triggers for ragged batch sizes; padded rows are sliced off.
        x2d = jnp.pad(x2d, ((0, bp - b), (0, 0)))

    # Weights/biases have a constant block index -> single-buffer them.
    wkw = dict(pipeline_mode=pl.Buffered(1)) if _HAS_BUFFERED else {}
    # x is the only per-step HBM stream; deepen its pipeline on mem-bound v6e.
    xkw = dict(pipeline_mode=pl.Buffered(3)) if (_IS_V6 and _HAS_BUFFERED) else {}

    vmem_est = _vmem_estimate(tb, in_dim, hidden, l_pad, x_bytes, w_bytes,
                              x_bufs, w_bufs)
    vmem_limit = int(min(_VMEM_CAP,
                         max(32 << 20, int(vmem_est * 1.25) + (4 << 20))))

    cost = pl.CostEstimate(
        flops=2 * bp * in_dim * hidden + 2 * bp * hidden * l_pad,
        transcendentals=bp * hidden,
        bytes_accessed=(bp * in_dim * x_bytes
                        + in_dim * hidden * w_bytes + hidden * 4
                        + hidden * l_pad * w_bytes + l_pad * 4
                        + bp * l_pad * 4),
    )

    out = pl.pallas_call(
        _head_kernel,
        out_shape=jax.ShapeDtypeStruct((bp, l_pad), jnp.float32),
        grid_spec=pltpu.PrefetchScalarGridSpec(
            num_scalar_prefetch=0,
            grid=(n_tiles,),
            in_specs=[
                # x tile: columns [0, 3H) of the flattened [B, S*3H] view.
                pl.BlockSpec((tb, in_dim), lambda i: (i, 0), **xkw),
                pl.BlockSpec((in_dim, hidden), lambda i: (0, 0), **wkw),
                pl.BlockSpec((1, hidden), lambda i: (0, 0), **wkw),
                pl.BlockSpec((hidden, l_pad), lambda i: (0, 0), **wkw),
                pl.BlockSpec((1, l_pad), lambda i: (0, 0), **wkw),
            ],
            out_specs=pl.BlockSpec((tb, l_pad), lambda i: (i, 0)),
        ),
        compiler_params=pltpu.CompilerParams(
            dimension_semantics=("parallel",),      # batch tiles independent
            vmem_limit_bytes=vmem_limit,
        ),
        cost_estimate=cost,
    )(x2d, w1, b1, w2, b2)

    # Slice off batch padding and label padding; stays f32 (free precision).
    return out[:b, :num_labels]


def triple_classification_head(features, params, *, tile_batch=512):
    """features: [B, S, 3H].  Returns logits [B, num_labels] in float32."""
    assert params["in_dim"] == features.shape[-1], "feature dim mismatch"
    return _head_forward(features, params["w1"], params["b1"],
                         params["w2"], params["b2"],
                         num_labels=params["num_labels"],
                         tile_batch=tile_batch)


def _reference(features, w_dense, b_dense, w_out, b_out):
    x = features[:, 0, :]
    x = jnp.tanh(x @ w_dense.T + b_dense)
    return x @ w_out.T + b_out


if __name__ == "__main__":
    # Small config: batch=2, seq=8, hidden=128 (dense input = 3*hidden = 384,
    # lane-dense so the fused CLS-slice path is exercised), num_labels=3.
    B, S, H, L = 2, 8, 128, 3
    key = jax.random.PRNGKey(0)
    k_feat, k_w1, k_b1, k_w2, k_b2 = jax.random.split(key, 5)

    features = jax.random.normal(k_feat, (B, S, 3 * H), dtype=jnp.float32)
    # torch nn.Linear stores weight as [out_features, in_features]
    w_dense = jax.random.normal(k_w1, (H, 3 * H), dtype=jnp.float32) * 0.02
    b_dense = jax.random.normal(k_b1, (H,), dtype=jnp.float32) * 0.02
    w_out = jax.random.normal(k_w2, (L, H), dtype=jnp.float32) * 0.02
    b_out = jax.random.normal(k_b2, (L,), dtype=jnp.float32) * 0.02

    ref = _reference(features, w_dense, b_dense, w_out, b_out)

    # 1) f32 compute path: structural correctness (fused slice, tiling, padding).
    p_f32 = prepare_head_params(w_dense, b_dense, w_out, b_out,
                                compute_dtype=jnp.float32)
    logits_f32 = jax.block_until_ready(triple_classification_head(features, p_f32))
    assert logits_f32.shape == (B, L)
    assert logits_f32.dtype == jnp.float32
    assert jnp.allclose(logits_f32, ref, atol=5e-4, rtol=5e-4)

    # 2) default bf16 compute path (f32 MXU accumulation, f32 logits).
    p_bf16 = prepare_head_params(w_dense, b_dense, w_out, b_out)
    logits_bf16 = jax.block_until_ready(triple_classification_head(features, p_bf16))
    assert logits_bf16.shape == (B, L)
    assert logits_bf16.dtype == jnp.float32
    assert jnp.allclose(logits_bf16, ref, atol=5e-2, rtol=5e-2)

    # TODO(synk): dropout omitted (module run in eval mode -> identity).
    print("KERNEL_OK")
</pallas_src>

<mosaic_0001>
module attributes {stable_mosaic.version = 11 : i64} {
  func.func @_head_kernel(%arg0: i32, %arg1: memref<8x384xf32, #tpu.memory_space<vmem>>, %arg2: memref<384x128xf32, #tpu.memory_space<vmem>>, %arg3: memref<1x128xf32, #tpu.memory_space<vmem>>, %arg4: memref<128x128xf32, #tpu.memory_space<vmem>>, %arg5: memref<1x128xf32, #tpu.memory_space<vmem>>, %arg6: memref<8x128xf32, #tpu.memory_space<vmem>>) attributes {dimension_semantics = [#tpu.dimension_semantics<parallel>], iteration_bounds = array<i64: 1>, scalar_prefetch = 0 : i64, scratch_operands = 0 : i64, tpu.core_type = #tpu.core_type<tc>, window_params = [{transform_indices = @transform_0, window_bounds = array<i64: 8, 384>}, {pipeline_mode = #tpu.pipeline_mode<synchronous>, transform_indices = @transform_1, window_bounds = array<i64: 384, 128>}, {pipeline_mode = #tpu.pipeline_mode<synchronous>, transform_indices = @transform_2, window_bounds = array<i64: 1, 128>}, {pipeline_mode = #tpu.pipeline_mode<synchronous>, transform_indices = @transform_3, window_bounds = array<i64: 128, 128>}, {pipeline_mode = #tpu.pipeline_mode<synchronous>, transform_indices = @transform_4, window_bounds = array<i64: 1, 128>}, {transform_indices = @transform_5, window_bounds = array<i64: 8, 128>}]} {
    %c0 = arith.constant 0 : index
    %c0_0 = arith.constant 0 : index
    %0 = vector.load %arg1[%c0, %c0_0] : memref<8x384xf32, #tpu.memory_space<vmem>>, vector<8x384xf32>
    %c0_1 = arith.constant 0 : index
    %c0_2 = arith.constant 0 : index
    %1 = vector.load %arg2[%c0_1, %c0_2] : memref<384x128xf32, #tpu.memory_space<vmem>>, vector<384x128xf32>
    %cst = arith.constant dense<0.000000e+00> : vector<8x128xf32>
    %2 = tpu.matmul %0, %1, %cst {dimension_numbers = #tpu.dot_dimension_numbers<[1], [0], [0], [1], [0, 0, 1, 1], [], []>} : vector<8x384xf32>, vector<384x128xf32>, vector<8x128xf32> -> vector<8x128xf32>
    %c0_3 = arith.constant 0 : index
    %c0_4 = arith.constant 0 : index
    %3 = vector.load %arg3[%c0_3, %c0_4] : memref<1x128xf32, #tpu.memory_space<vmem>>, vector<1x128xf32>
    %4 = vector.broadcast %3 : vector<1x128xf32> to vector<8x128xf32>
    %5 = arith.addf %2, %4 : vector<8x128xf32>
    %6 = math.tanh %5 : vector<8x128xf32>
    %c0_5 = arith.constant 0 : index
    %c0_6 = arith.constant 0 : index
    %7 = vector.load %arg4[%c0_5, %c0_6] : memref<128x128xf32, #tpu.memory_space<vmem>>, vector<128x128xf32>
    %cst_7 = arith.constant dense<0.000000e+00> : vector<8x128xf32>
    %8 = tpu.matmul %6, %7, %cst_7 {dimension_numbers = #tpu.dot_dimension_numbers<[1], [0], [0], [1], [0, 0, 1, 1], [], []>} : vector<8x128xf32>, vector<128x128xf32>, vector<8x128xf32> -> vector<8x128xf32>
    %c0_8 = arith.constant 0 : index
    %c0_9 = arith.constant 0 : index
    %9 = vector.load %arg5[%c0_8, %c0_9] : memref<1x128xf32, #tpu.memory_space<vmem>>, vector<1x128xf32>
    %10 = vector.broadcast %9 : vector<1x128xf32> to vector<8x128xf32>
    %11 = arith.addf %8, %10 : vector<8x128xf32>
    %c0_10 = arith.constant 0 : index
    %c0_11 = arith.constant 0 : index
    %12 = vector.load %arg6[%c0_10, %c0_11] : memref<8x128xf32, #tpu.memory_space<vmem>>, vector<8x128xf32>
    tpu.vector_store %arg6[%c0_10, %c0_11], %11 {strides = array<i32>} : memref<8x128xf32, #tpu.memory_space<vmem>>, vector<8x128xf32>,
    return
  }
  func.func @transform_0(%arg0: i32) -> (i32, i32) {
    %c0_i32 = arith.constant 0 : i32
    %c0_i32_0 = arith.constant 0 : i32
    return %arg0, %c0_i32 : i32, i32
  }
  func.func @transform_1(%arg0: i32) -> (i32, i32) {
    %c0_i32 = arith.constant 0 : i32
    %c0_i32_0 = arith.constant 0 : i32
    %c0_i32_1 = arith.constant 0 : i32
    return %c0_i32, %c0_i32_0 : i32, i32
  }
  func.func @transform_2(%arg0: i32) -> (i32, i32) {
    %c0_i32 = arith.constant 0 : i32
    %c0_i32_0 = arith.constant 0 : i32
    %c0_i32_1 = arith.constant 0 : i32
    return %c0_i32, %c0_i32_0 : i32, i32
  }
  func.func @transform_3(%arg0: i32) -> (i32, i32) {
    %c0_i32 = arith.constant 0 : i32
    %c0_i32_0 = arith.constant 0 : i32
    %c0_i32_1 = arith.constant 0 : i32
    return %c0_i32, %c0_i32_0 : i32, i32
  }
  func.func @transform_4(%arg0: i32) -> (i32, i32) {
    %c0_i32 = arith.constant 0 : i32
    %c0_i32_0 = arith.constant 0 : i32
    %c0_i32_1 = arith.constant 0 : i32
    return %c0_i32, %c0_i32_0 : i32, i32
  }
  func.func @transform_5(%arg0: i32) -> (i32, i32) {
    %c0_i32 = arith.constant 0 : i32
    %c0_i32_0 = arith.constant 0 : i32
    return %arg0, %c0_i32 : i32, i32
  }
}

</mosaic_0001>

<llo_original>
// kernel: _head_forward.1
$region0: #{_head_forward.1}
  #allocation0 [shape = 'u32[]', space=smem, size = 0x4, offset = 0x4, fixed_abs, tag = 'smem constant byte address 0x4 - core index']
  #allocation1 [shape = 'u32[144,128]{1,0:T(1,128)}', space=vmem, size = 0x12000, scoped, tag = 'internal scratch']
  %s0 = inlined_call_operand.vmem [shape: f32[8,3072], index: 0, kind: input, shape index: {}]
  %s1 = inlined_call_operand.hbm [shape: f32[384,128], index: 1, kind: input, shape index: {}]
  %s2 = inlined_call_operand.vmem [shape: f32[1,128], index: 2, kind: input, shape index: {}]
  %s3 = inlined_call_operand.vmem [shape: f32[128,128], index: 3, kind: input, shape index: {}]
  %s4 = inlined_call_operand.vmem [shape: f32[1,128], index: 4, kind: input, shape index: {}]
  %s5 = inlined_call_operand.vmem [shape: f32[8,128], index: 5, kind: output, shape index: {}]
  %s6 = sld [smem:[#allocation0]]
  $region34: #{_head_forward.1} parent=0
    _
  %s8 = ssub.s32 1, %s6
  %s9 = scalar_select 0, %s8, %s6
  $region1: #{_head_forward.1} parent=0
    #allocation2 [shape = 'u8[196608]{0}', space=vmem, size = 0x30000, scoped, tag = 'input window, operand 1, single buffered']
    #allocation3 [shape = 's32[1]{0}', space=sflag, size = 0x4, scoped, tag = 'scoped memory for _head_forward.1']
    %10 = vsyncpa [#allocation3], 0
    // Predicated region
    $region2: #{_head_forward.1} parent=1 // pred_check
      _
    $region3: #{_head_forward.1} parent=1 // pred_check_branch
      %12 = sbr.rel (0) target = $region5
    $region4: #{_head_forward.1} parent=1 // pred_region
      _
    $region5: #{_head_forward.1} parent=1 // pred_fallthru
      _
    // Predicated region
    $region6: #{_head_forward.1} parent=1 // pred_check
      _
    $region7: #{_head_forward.1} parent=1 // pred_check_branch
      %14 = sbr.rel (0) target = $region9
    $region8: #{_head_forward.1} parent=1 // pred_region
      %s16 = ssub.s32 6144, 6144
      %17 = vsyncadd [#allocation3], %s16
      %s18 = sshll.u32 [#allocation2], 4
      %s19 = int_to_ptr.vmem [resolvable:$true] %s18
      %24 = dma.hbm_to_vmem [thread:$0]  %s1, 6144, %s19, [#allocation3], 128, 128, 8
    $region9: #{_head_forward.1} parent=1 // pred_fallthru
      _
    // Predicated region
    $region10: #{_head_forward.1} parent=1 // pred_check
      _
    $region11: #{_head_forward.1} parent=1 // pred_check_branch
      %26 = sbr.rel (0) target = $region13
    $region12: #{_head_forward.1} parent=1 // pred_region
      _
    $region13: #{_head_forward.1} parent=1 // pred_fallthru
      _
    // Predicated region
    $region14: #{_head_forward.1} parent=1 // pred_check
      _
    $region15: #{_head_forward.1} parent=1 // pred_check_branch
      %28 = sbr.rel (0) target = $region17
    $region16: #{_head_forward.1} parent=1 // pred_region
      _
    $region17: #{_head_forward.1} parent=1 // pred_fallthru
      _
    // Predicated region
    $region18: #{_head_forward.1} parent=1 // pred_check
      _
    $region19: #{_head_forward.1} parent=1 // pred_check_branch
      %30 = sbr.rel (0) target = $region21
    $region20: #{_head_forward.1} parent=1 // pred_region
      _
    $region21: #{_head_forward.1} parent=1 // pred_fallthru
      _
    // Predicated region
    $region22: #{_head_forward.1} parent=1 // pred_check
      _
    $region23: #{_head_forward.1} parent=1 // pred_check_branch
      %32 = sbr.rel (0) target = $region25
    $region24: #{_head_forward.1} parent=1 // pred_region
      %33 = dma.done [#allocation3], 6144
    $region25: #{_head_forward.1} parent=1 // pred_fallthru
      _
    %v34 = vld [vmem:[%s0] sm:$0xff]
    %v35 = vld [vmem:[%s0 + $0x8] sm:$0xff]
    %v36 = vld [vmem:[%s0 + $0x10] sm:$0xff]
    %v37 = vld [vmem:[#allocation2] sm:$0xff]
    %v38 = vld [vmem:[#allocation2 + $0x8] sm:$0xff]
    %v39 = vld [vmem:[#allocation2 + $0x10] sm:$0xff]
    %v40 = vld [vmem:[#allocation2 + $0x18] sm:$0xff]
    %v41 = vld [vmem:[#allocation2 + $0x20] sm:$0xff]
    %v42 = vld [vmem:[#allocation2 + $0x28] sm:$0xff]
    %v43 = vld [vmem:[#allocation2 + $0x30] sm:$0xff]
    %v44 = vld [vmem:[#allocation2 + $0x38] sm:$0xff]
    %v45 = vld [vmem:[#allocation2 + $0x40] sm:$0xff]
    %v46 = vld [vmem:[#allocation2 + $0x48] sm:$0xff]
    %v47 = vld [vmem:[#allocation2 + $0x50] sm:$0xff]
    %v48 = vld [vmem:[#allocation2 + $0x58] sm:$0xff]
    %v49 = vld [vmem:[#allocation2 + $0x60] sm:$0xff]
    %v50 = vld [vmem:[#allocation2 + $0x68] sm:$0xff]
    %v51 = vld [vmem:[#allocation2 + $0x70] sm:$0xff]
    %v52 = vld [vmem:[#allocation2 + $0x78] sm:$0xff]
    %v53 = vld [vmem:[#allocation2 + $0x80] sm:$0xff]
    %v54 = vld [vmem:[#allocation2 + $0x88] sm:$0xff]
    %v55 = vld [vmem:[#allocation2 + $0x90] sm:$0xff]
    %v56 = vld [vmem:[#allocation2 + $0x98] sm:$0xff]
    %v57 = vld [vmem:[#allocation2 + $0xa0] sm:$0xff]
    %v58 = vld [vmem:[#allocation2 + $0xa8] sm:$0xff]
    %v59 = vld [vmem:[#allocation2 + $0xb0] sm:$0xff]
    %v60 = vld [vmem:[#allocation2 + $0xb8] sm:$0xff]
    %v61 = vld [vmem:[#allocation2 + $0xc0] sm:$0xff]
    %v62 = vld [vmem:[#allocation2 + $0xc8] sm:$0xff]
    %v63 = vld [vmem:[#allocation2 + $0xd0] sm:$0xff]
    %v64 = vld [vmem:[#allocation2 + $0xd8] sm:$0xff]
    %v65 = vld [vmem:[#allocation2 + $0xe0] sm:$0xff]
    %v66 = vld [vmem:[#allocation2 + $0xe8] sm:$0xff]
    %v67 = vld [vmem:[#allocation2 + $0xf0] sm:$0xff]
    %v68 = vld [vmem:[#allocation2 + $0xf8] sm:$0xff]
    %v69 = vld [vmem:[#allocation2 + $0x100] sm:$0xff]
    %v70 = vld [vmem:[#allocation2 + $0x108] sm:$0xff]
    %v71 = vld [vmem:[#allocation2 + $0x110] sm:$0xff]
    %v72 = vld [vmem:[#allocation2 + $0x118] sm:$0xff]
    %v73 = vld [vmem:[#allocation2 + $0x120] sm:$0xff]
    %v74 = vld [vmem:[#allocation2 + $0x128] sm:$0xff]
    %v75 = vld [vmem:[#allocation2 + $0x130] sm:$0xff]
    %v76 = vld [vmem:[#allocation2 + $0x138] sm:$0xff]
    %v77 = vld [vmem:[#allocation2 + $0x140] sm:$0xff]
    %v78 = vld [vmem:[#allocation2 + $0x148] sm:$0xff]
    %v79 = vld [vmem:[#allocation2 + $0x150] sm:$0xff]
    %v80 = vld [vmem:[#allocation2 + $0x158] sm:$0xff]
    %v81 = vld [vmem:[#allocation2 + $0x160] sm:$0xff]
    %v82 = vld [vmem:[#allocation2 + $0x168] sm:$0xff]
    %v83 = vld [vmem:[#allocation2 + $0x170] sm:$0xff]
    %v84 = vld [vmem:[#allocation2 + $0x178] sm:$0xff]
    %v85 = vld [vmem:[%s2] sm:$0x1]
    %v87 = vlaneseq
    %v88 = vshrl.u32 %v87, 7
    %v89 = vsub.s32 0, %v88
    %v90 = vrot.slane %v85, %v89
    %92 = vmatprep.subr.mxu0 0.0
    %93 = vmatpush1.msra.mxu0 %v52
    %94 = vmatprep.subr.mxu0 0.0
    %95 = vmatpush1.msra.mxu0 %v51
    %96 = vmatprep.subr.mxu0 0.0
    %97 = vmatpush1.msra.mxu0 %v50
    %98 = vmatprep.subr.mxu0 0.0
    %99 = vmatpush1.msra.mxu0 %v49
    %100 = vmatprep.subr.mxu0 0.0
    %101 = vmatpush1.msra.mxu0 %v48
    %102 = vmatprep.subr.mxu0 0.0
    %103 = vmatpush1.msra.mxu0 %v47
    %104 = vmatprep.subr.mxu0 0.0
    %105 = vmatpush1.msra.mxu0 %v46
    %106 = vmatprep.subr.mxu0 0.0
    %107 = vmatpush1.msra.mxu0 %v45
    %108 = vmatprep.subr.mxu0 0.0
    %109 = vmatpush1.msra.mxu0 %v44
    %110 = vmatprep.subr.mxu0 0.0
    %111 = vmatpush1.msra.mxu0 %v43
    %112 = vmatprep.subr.mxu0 0.0
    %113 = vmatpush1.msra.mxu0 %v42
    %114 = vmatprep.subr.mxu0 0.0
    %115 = vmatpush1.msra.mxu0 %v41
    %116 = vmatprep.subr.mxu0 0.0
    %117 = vmatpush1.msra.mxu0 %v40
    %118 = vmatprep.subr.mxu0 0.0
    %119 = vmatpush1.msra.mxu0 %v39
    %120 = vmatprep.subr.mxu0 0.0
    %121 = vmatpush1.msra.mxu0 %v38
    %122 = vmatprep.subr.mxu0 0.0
    %123 = vmatpush1.msra.mxu0 %v37
    %124 = vmatprep.subr.mxu0 0.0
    %125 = vmatpush2.msra.mxu0 %v68
    %126 = vmatprep.subr.mxu0 0.0
    %127 = vmatpush2.msra.mxu0 %v67
    %128 = vmatprep.subr.mxu0 0.0
    %129 = vmatpush2.msra.mxu0 %v66
    %130 = vmatprep.subr.mxu0 0.0
    %131 = vmatpush2.msra.mxu0 %v65
    %132 = vmatprep.subr.mxu0 0.0
    %133 = vmatpush2.msra.mxu0 %v64
    %134 = vmatprep.subr.mxu0 0.0
    %135 = vmatpush2.msra.mxu0 %v63
    %136 = vmatprep.subr.mxu0 0.0
    %137 = vmatpush2.msra.mxu0 %v62
    %138 = vmatprep.subr.mxu0 0.0
    %139 = vmatpush2.msra.mxu0 %v61
    %140 = vmatprep.subr.mxu0 0.0
    %141 = vmatpush2.msra.mxu0 %v60
    %142 = vmatprep.subr.mxu0 0.0
    %143 = vmatpush2.msra.mxu0 %v59
    %144 = vmatprep.subr.mxu0 0.0
    %145 = vmatpush2.msra.mxu0 %v58
    %146 = vmatprep.subr.mxu0 0.0
    %147 = vmatpush2.msra.mxu0 %v57
    %148 = vmatprep.subr.mxu0 0.0
    %149 = vmatpush2.msra.mxu0 %v56
    %150 = vmatprep.subr.mxu0 0.0
    %151 = vmatpush2.msra.mxu0 %v55
    %152 = vmatprep.subr.mxu0 0.0
    %153 = vmatpush2.msra.mxu0 %v54
    %154 = vmatprep.subr.mxu0 0.0
    %155 = vmatpush2.msra.mxu0 %v53
    %156 = vmatprep.mubr.f32.mxu0 %v35
    %157 = vmatmul.mubr.f32.gmra.mxu0 %v34
    %v158 = vpop.f32.mrf.mxu0
    %v159 = vadd.f32 %v90, %v158
    %v160 = vpop.f32.mrf.mxu0
    %161 = vdwg.mxu0
    %162 = vmatprep.subr.mxu0 0.0
    %163 = vmatpush1.msra.mxu0 %v84
    %164 = vmatprep.subr.mxu0 0.0
    %165 = vmatpush1.msra.mxu0 %v83
    %166 = vmatprep.subr.mxu0 0.0
    %167 = vmatpush1.msra.mxu0 %v82
    %168 = vmatprep.subr.mxu0 0.0
    %169 = vmatpush1.msra.mxu0 %v81
    %170 = vmatprep.subr.mxu0 0.0
    %171 = vmatpush1.msra.mxu0 %v80
    %172 = vmatprep.subr.mxu0 0.0
    %173 = vmatpush1.msra.mxu0 %v79
    %174 = vmatprep.subr.mxu0 0.0
    %175 = vmatpush1.msra.mxu0 %v78
    %176 = vmatprep.subr.mxu0 0.0
    %177 = vmatpush1.msra.mxu0 %v77
    %178 = vmatprep.subr.mxu0 0.0
    %179 = vmatpush1.msra.mxu0 %v76
    %180 = vmatprep.subr.mxu0 0.0
    %181 = vmatpush1.msra.mxu0 %v75
    %182 = vmatprep.subr.mxu0 0.0
    %183 = vmatpush1.msra.mxu0 %v74
    %184 = vmatprep.subr.mxu0 0.0
    %185 = vmatpush1.msra.mxu0 %v73
    %186 = vmatprep.subr.mxu0 0.0
    %187 = vmatpush1.msra.mxu0 %v72
    %188 = vmatprep.subr.mxu0 0.0
    %189 = vmatpush1.msra.mxu0 %v71
    %190 = vmatprep.subr.mxu0 0.0
    %191 = vmatpush1.msra.mxu0 %v70
    %192 = vmatprep.subr.mxu0 0.0
    %193 = vmatpush1.msra.mxu0 %v69
    %194 = vmatprep.subr.mxu0 0.0
    %195 = vmatpush2.msra.mxu0 0.0
    %196 = vmatprep.subr.mxu0 0.0
    %197 = vmatpush2.msra.mxu0 0.0
    %198 = vmatprep.subr.mxu0 0.0
    %199 = vmatpush2.msra.mxu0 0.0
    %200 = vmatprep.subr.mxu0 0.0
    %201 = vmatpush2.msra.mxu0 0.0
    %202 = vmatprep.subr.mxu0 0.0
    %203 = vmatpush2.msra.mxu0 0.0
    %204 = vmatprep.subr.mxu0 0.0
    %205 = vmatpush2.msra.mxu0 0.0
    %206 = vmatprep.subr.mxu0 0.0
    %207 = vmatpush2.msra.mxu0 0.0
    %208 = vmatprep.subr.mxu0 0.0
    %209 = vmatpush2.msra.mxu0 0.0
    %210 = vmatprep.subr.mxu0 0.0
    %211 = vmatpush2.msra.mxu0 0.0
    %212 = vmatprep.subr.mxu0 0.0
    %213 = vmatpush2.msra.mxu0 0.0
    %214 = vmatprep.subr.mxu0 0.0
    %215 = vmatpush2.msra.mxu0 0.0
    %216 = vmatprep.subr.mxu0 0.0
    %217 = vmatpush2.msra.mxu0 0.0
    %218 = vmatprep.subr.mxu0 0.0
    %219 = vmatpush2.msra.mxu0 0.0
    %220 = vmatprep.subr.mxu0 0.0
    %221 = vmatpush2.msra.mxu0 0.0
    %222 = vmatprep.subr.mxu0 0.0
    %223 = vmatpush2.msra.mxu0 0.0
    %224 = vmatprep.subr.mxu0 0.0
    %225 = vmatpush2.msra.mxu0 0.0
    %226 = vmatprep.mubr.f32.mxu0 0.0
    %227 = vmatmul.mubr.f32.gmra.mxu0 %v36
    %v228 = vpop.f32.mrf.mxu0
    %v229 = vadd.f32 %v159, %v228
    %v230 = vpop.f32.mrf.mxu0
    %231 = vdwg.mxu0
    %v232 = vtanh.pop %v229
    %v233 = vld [vmem:[%s3] sm:$0xff]
    %v234 = vld [vmem:[%s3 + $0x8] sm:$0xff]
    %v235 = vld [vmem:[%s3 + $0x10] sm:$0xff]
    %v236 = vld [vmem:[%s3 + $0x18] sm:$0xff]
    %v237 = vld [vmem:[%s3 + $0x20] sm:$0xff]
    %v238 = vld [vmem:[%s3 + $0x28] sm:$0xff]
    %v239 = vld [vmem:[%s3 + $0x30] sm:$0xff]
    %v240 = vld [vmem:[%s3 + $0x38] sm:$0xff]
    %v241 = vld [vmem:[%s3 + $0x40] sm:$0xff]
    %v242 = vld [vmem:[%s3 + $0x48] sm:$0xff]
    %v243 = vld [vmem:[%s3 + $0x50] sm:$0xff]
    %v244 = vld [vmem:[%s3 + $0x58] sm:$0xff]
    %v245 = vld [vmem:[%s3 + $0x60] sm:$0xff]
    %v246 = vld [vmem:[%s3 + $0x68] sm:$0xff]
    %v247 = vld [vmem:[%s3 + $0x70] sm:$0xff]
    %v248 = vld [vmem:[%s3 + $0x78] sm:$0xff]
    %v249 = vld [vmem:[%s4] sm:$0x1]
    %v251 = vlaneseq
    %v252 = vshrl.u32 %v251, 7
    %v253 = vsub.s32 0, %v252
    %v254 = vrot.slane %v249, %v253
    %256 = vmatprep.subr.mxu0 0.0
    %257 = vmatpush1.msra.mxu0 %v248
    %258 = vmatprep.subr.mxu0 0.0
    %259 = vmatpush1.msra.mxu0 %v247
    %260 = vmatprep.subr.mxu0 0.0
    %261 = vmatpush1.msra.mxu0 %v246
    %262 = vmatprep.subr.mxu0 0.0
    %263 = vmatpush1.msra.mxu0 %v245
    %264 = vmatprep.subr.mxu0 0.0
    %265 = vmatpush1.msra.mxu0 %v244
    %266 = vmatprep.subr.mxu0 0.0
    %267 = vmatpush1.msra.mxu0 %v243
    %268 = vmatprep.subr.mxu0 0.0
    %269 = vmatpush1.msra.mxu0 %v242
    %270 = vmatprep.subr.mxu0 0.0
    %271 = vmatpush1.msra.mxu0 %v241
    %272 = vmatprep.subr.mxu0 0.0
    %273 = vmatpush1.msra.mxu0 %v240
    %274 = vmatprep.subr.mxu0 0.0
    %275 = vmatpush1.msra.mxu0 %v239
    %276 = vmatprep.subr.mxu0 0.0
    %277 = vmatpush1.msra.mxu0 %v238
    %278 = vmatprep.subr.mxu0 0.0
    %279 = vmatpush1.msra.mxu0 %v237
    %280 = vmatprep.subr.mxu0 0.0
    %281 = vmatpush1.msra.mxu0 %v236
    %282 = vmatprep.subr.mxu0 0.0
    %283 = vmatpush1.msra.mxu0 %v235
    %284 = vmatprep.subr.mxu0 0.0
    %285 = vmatpush1.msra.mxu0 %v234
    %286 = vmatprep.subr.mxu0 0.0
    %287 = vmatpush1.msra.mxu0 %v233
    %288 = vmatprep.subr.mxu0 0.0
    %289 = vmatpush2.msra.mxu0 0.0
    %290 = vmatprep.subr.mxu0 0.0
    %291 = vmatpush2.msra.mxu0 0.0
    %292 = vmatprep.subr.mxu0 0.0
    %293 = vmatpush2.msra.mxu0 0.0
    %294 = vmatprep.subr.mxu0 0.0
    %295 = vmatpush2.msra.mxu0 0.0
    %296 = vmatprep.subr.mxu0 0.0
    %297 = vmatpush2.msra.mxu0 0.0
    %298 = vmatprep.subr.mxu0 0.0
    %299 = vmatpush2.msra.mxu0 0.0
    %300 = vmatprep.subr.mxu0 0.0
    %301 = vmatpush2.msra.mxu0 0.0
    %302 = vmatprep.subr.mxu0 0.0
    %303 = vmatpush2.msra.mxu0 0.0
    %304 = vmatprep.subr.mxu0 0.0
    %305 = vmatpush2.msra.mxu0 0.0
    %306 = vmatprep.subr.mxu0 0.0
    %307 = vmatpush2.msra.mxu0 0.0
    %308 = vmatprep.subr.mxu0 0.0
    %309 = vmatpush2.msra.mxu0 0.0
    %310 = vmatprep.subr.mxu0 0.0
    %311 = vmatpush2.msra.mxu0 0.0
    %312 = vmatprep.subr.mxu0 0.0
    %313 = vmatpush2.msra.mxu0 0.0
    %314 = vmatprep.subr.mxu0 0.0
    %315 = vmatpush2.msra.mxu0 0.0
    %316 = vmatprep.subr.mxu0 0.0
    %317 = vmatpush2.msra.mxu0 0.0
    %318 = vmatprep.subr.mxu0 0.0
    %319 = vmatpush2.msra.mxu0 0.0
    %320 = vmatprep.mubr.f32.mxu0 0.0
    %321 = vmatmul.mubr.f32.gmra.mxu0 %v232
    %v322 = vpop.f32.mrf.mxu0
    %v323 = vadd.f32 %v254, %v322
    %v324 = vpop.f32.mrf.mxu0
    %325 = vdwg.mxu0
    %326 = vst [vmem:[%s5] sm:$0xff] %v323
    // Predicated region
    $region26: #{_head_forward.1} parent=1 // pred_check
      _
    $region27: #{_head_forward.1} parent=1 // pred_check_branch
      %328 = sbr.rel (0) target = $region29
    $region28: #{_head_forward.1} parent=1 // pred_region
      _
    $region29: #{_head_forward.1} parent=1 // pred_fallthru
      _
    // Predicated region
    $region30: #{_head_forward.1} parent=1 // pred_check
      _
    $region31: #{_head_forward.1} parent=1 // pred_check_branch
      %330 = sbr.rel (0) target = $region33
    $region32: #{_head_forward.1} parent=1 // pred_region
      _
    $region33: #{_head_forward.1} parent=1 // pred_fallthru
      _
    %331 = vsyncpa [#allocation3], 1

</llo_original>
